<compile_context>
chip_gen: v5e
topology: v5e:2x2
jax: 0.10.0
libtpu: 0.0.40
codegen_flags: <defaults>
</compile_context>

<pallas_src>
import functools
import math

import jax
import jax.numpy as jnp
from jax.experimental import pallas as pl
from jax.experimental.pallas import tpu as pltpu


# Safe on all of v5e / v6e (128 MiB physical) and v7x (64 MiB physical).
_VMEM_LIMIT_BYTES = 48 * 1024 * 1024


def _largest_tile(n, align, cap):
    """Largest multiple of `align` that divides n and is <= cap (fallback: n)."""
    if n % align != 0:
        return n
    t = min(cap, n)
    t -= t % align
    while t >= align:
        if n % t == 0:
            return t
        t -= align
    return n


def _lane_tile(n, cap=512):
    """Tile for a lane-mapped (last) dim: multiple of 128 dividing n, else full dim."""
    if n % 128 != 0:
        return n
    return _largest_tile(n, 128, cap)


# ---------------------------------------------------------------------------
# General linear: X (M, K) @ W (K, N) -> (M, N), tiled over M / N / K with a
# VMEM f32 accumulator (K is the trailing "arbitrary" reduction axis).
# ---------------------------------------------------------------------------
def _linear_kernel(x_ref, w_ref, o_ref, acc_ref):
    @pl.when(pl.program_id(2) == 0)
    def _init():
        acc_ref[...] = jnp.zeros(acc_ref.shape, jnp.float32)

    acc_ref[...] += jnp.dot(x_ref[...], w_ref[...],
                            preferred_element_type=jnp.float32)

    @pl.when(pl.program_id(2) == pl.num_programs(2) - 1)
    def _store():
        o_ref[...] = acc_ref[...].astype(o_ref.dtype)


def linear(x2d, w):
    M, K = x2d.shape
    Kw, N = w.shape
    assert K == Kw
    tm = _largest_tile(M, 8, 512)
    tn = _lane_tile(N, 512)
    tk = _lane_tile(K, 512)
    return pl.pallas_call(
        _linear_kernel,
        out_shape=jax.ShapeDtypeStruct((M, N), x2d.dtype),
        grid_spec=pltpu.PrefetchScalarGridSpec(
            num_scalar_prefetch=0,
            grid=(M // tm, N // tn, K // tk),
            in_specs=[
                pl.BlockSpec((tm, tk), lambda i, j, k: (i, k)),   # activations
                pl.BlockSpec((tk, tn), lambda i, j, k: (k, j)),   # weight tile
            ],
            out_specs=pl.BlockSpec((tm, tn), lambda i, j, k: (i, j)),
            scratch_shapes=[pltpu.VMEM((tm, tn), jnp.float32)],
        ),
        compiler_params=pltpu.CompilerParams(
            dimension_semantics=("parallel", "parallel", "arbitrary"),
            vmem_limit_bytes=_VMEM_LIMIT_BYTES,
        ),
    )(x2d, w)


# ---------------------------------------------------------------------------
# Fused QKV projection for self-attention: X (M, d) is streamed ONCE through
# VMEM, the stacked weight (3, d, nh) stays resident, output is a lane-dense
# (3, M, nh) slab consumed directly by the attention kernel (leading-axis
# BlockSpec index 0/1/2 -> no slice copies in HBM).
# ---------------------------------------------------------------------------
def _fused_qkv_kernel(x_ref, w_ref, o_ref):
    x = x_ref[...]
    for g in range(3):
        o_ref[g] = jnp.dot(x, w_ref[g],
                           preferred_element_type=jnp.float32).astype(o_ref.dtype)


def fused_qkv_projection(x2d, w_stack):
    M, d = x2d.shape
    _, _, nh = w_stack.shape
    tm = _largest_tile(M, 8, 512)
    return pl.pallas_call(
        _fused_qkv_kernel,
        out_shape=jax.ShapeDtypeStruct((3, M, nh), x2d.dtype),
        grid_spec=pltpu.PrefetchScalarGridSpec(
            num_scalar_prefetch=0,
            grid=(M // tm,),
            in_specs=[
                pl.BlockSpec((tm, d), lambda i: (i, 0)),        # X, streamed once
                pl.BlockSpec((3, d, nh), lambda i: (0, 0, 0)),  # W_q|W_k|W_v resident
            ],
            out_specs=pl.BlockSpec((3, tm, nh), lambda i: (0, i, 0)),
        ),
        compiler_params=pltpu.CompilerParams(
            dimension_semantics=("parallel",),
            vmem_limit_bytes=_VMEM_LIMIT_BYTES,
        ),
    )(x2d, w_stack)


def _fused_qkv_ok(d, nh, dtype):
    # Keep the resident (double-buffered) stacked weight comfortably inside
    # VMEM; otherwise fall back to the tiled general `linear`.
    return 3 * d * nh * jnp.dtype(dtype).itemsize <= 12 * 1024 * 1024


# ---------------------------------------------------------------------------
# Flash-style multi-head scaled dot-product attention.
#
# Layout: Q/K/V/out are in concat-head layout (B, S, H*Dh).  Grid is
# (batch, q-tiles, k-tiles) with the key axis last ("arbitrary").  All heads
# are processed inside each grid step -> lane-dense output block (tq, H*Dh).
# Online softmax state (m, l) and the output accumulator live in VMEM scratch.
# valid_lens (per batch) is scalar-prefetched into SMEM; key tiles entirely
# past the valid prefix are skipped.
# ---------------------------------------------------------------------------
def _mha_attention_kernel(vl_ref, q_ref, k_ref, v_ref, o_ref,
                          m_ref, l_ref, acc_ref,
                          *, num_heads, head_dim, scale, mask_value):
    b = pl.program_id(0)
    kv = pl.program_id(2)
    tq = q_ref.shape[-2]
    tk = k_ref.shape[-2]

    @pl.when(kv == 0)
    def _init():
        m_ref[...] = jnp.full(m_ref.shape, -jnp.inf, dtype=jnp.float32)
        l_ref[...] = jnp.zeros(l_ref.shape, jnp.float32)
        acc_ref[...] = jnp.zeros(acc_ref.shape, jnp.float32)

    vl = vl_ref[b]

    # Key tiles entirely past the valid prefix contribute exp(-1e6 - m) == 0,
    # so they can be skipped.  Exception: valid_len == 0 means "all masked",
    # where PyTorch's masked softmax yields a uniform distribution, so we must
    # still process the (fully masked) tiles in that case.
    @pl.when(jnp.logical_or(kv * tk < vl, vl == 0))
    def _body():
        q = q_ref[...]                                    # (tq, H*Dh), native dtype
        k = k_ref[...]                                    # (tk, H*Dh)
        v = v_ref[...]                                    # (tk, H*Dh)
        col = kv * tk + jax.lax.broadcasted_iota(jnp.int32, (tq, tk), 1)
        key_mask = col < vl
        for h in range(num_heads):
            sl = slice(h * head_dim, (h + 1) * head_dim)
            qh = q[:, sl] * scale                         # fold 1/sqrt(Dh) into (tq, Dh)
            s = jax.lax.dot_general(                      # (tq, tk), MXU, f32 accum
                qh, k[:, sl], (((1,), (1,)), ((), ())),
                preferred_element_type=jnp.float32)
            s = jnp.where(key_mask, s, mask_value)
            m_prev = m_ref[h]                             # (tq, 1)
            m_new = jnp.maximum(m_prev, jnp.max(s, axis=-1, keepdims=True))
            alpha = jnp.exp(m_prev - m_new)
            p = jnp.exp(s - m_new)
            l_ref[h] = alpha * l_ref[h] + jnp.sum(p, axis=-1, keepdims=True)
            m_ref[h] = m_new
            acc_ref[:, sl] = alpha * acc_ref[:, sl] + jnp.dot(
                p.astype(v.dtype), v[:, sl], preferred_element_type=jnp.float32)

    @pl.when(kv == pl.num_programs(2) - 1)
    def _finalize():
        # Normalize once on the (tq, Dh)-sized accumulator per head (not on
        # the (tq, Sk) probabilities); reciprocal goes to the EUP slot.
        for h in range(num_heads):
            sl = slice(h * head_dim, (h + 1) * head_dim)
            inv = pl.reciprocal(l_ref[h], approx=True)    # (tq, 1)
            o_ref[:, sl] = (acc_ref[:, sl] * inv).astype(o_ref.dtype)


def _run_attention(operands, in_specs, B, Sq, Sk, nh, num_heads,
                   out_dtype, vl_b, tq, tk):
    Dh = nh // num_heads
    kernel = functools.partial(
        _mha_attention_kernel, num_heads=num_heads, head_dim=Dh,
        scale=1.0 / math.sqrt(Dh), mask_value=-1e6)
    return pl.pallas_call(
        kernel,
        out_shape=jax.ShapeDtypeStruct((B, Sq, nh), out_dtype),
        grid_spec=pltpu.PrefetchScalarGridSpec(
            num_scalar_prefetch=1,                          # valid_lens -> SMEM
            grid=(B, Sq // tq, Sk // tk),
            in_specs=in_specs,
            out_specs=pl.BlockSpec((None, tq, nh), lambda b, i, kv, vl: (b, i, 0)),
            scratch_shapes=[
                pltpu.VMEM((num_heads, tq, 1), jnp.float32),   # running max m
                pltpu.VMEM((num_heads, tq, 1), jnp.float32),   # running sum l
                pltpu.VMEM((tq, nh), jnp.float32),             # output accumulator
            ],
        ),
        compiler_params=pltpu.CompilerParams(
            dimension_semantics=("parallel", "parallel", "arbitrary"),
            vmem_limit_bytes=_VMEM_LIMIT_BYTES,
        ),
    )(vl_b, *operands)


def dot_product_attention(q, k, v, vl_b, num_heads):
    """q: (B, Sq, nh), k/v: (B, Sk, nh), vl_b: (B,) int32 -> (B, Sq, nh)."""
    B, Sq, nh = q.shape
    _, Sk, _ = k.shape
    tq = _largest_tile(Sq, 8, 256)
    tk = _largest_tile(Sk, 8, 256)
    in_specs = [
        pl.BlockSpec((None, tq, nh), lambda b, i, kv, vl: (b, i, 0)),   # Q tile
        pl.BlockSpec((None, tk, nh), lambda b, i, kv, vl: (b, kv, 0)),  # K tile
        pl.BlockSpec((None, tk, nh), lambda b, i, kv, vl: (b, kv, 0)),  # V tile
    ]
    return _run_attention((q, k, v), in_specs, B, Sq, Sk, nh, num_heads,
                          q.dtype, vl_b, tq, tk)


def dot_product_attention_fused(qkv, vl_b, num_heads):
    """qkv: (3, B, S, nh) stacked Q/K/V from the fused projection."""
    _, B, S, nh = qkv.shape
    tq = _largest_tile(S, 8, 256)
    tk = tq
    in_specs = [
        pl.BlockSpec((None, None, tq, nh), lambda b, i, kv, vl: (0, b, i, 0)),
        pl.BlockSpec((None, None, tk, nh), lambda b, i, kv, vl: (1, b, kv, 0)),
        pl.BlockSpec((None, None, tk, nh), lambda b, i, kv, vl: (2, b, kv, 0)),
    ]
    return _run_attention((qkv, qkv, qkv), in_specs, B, S, S, nh, num_heads,
                          qkv.dtype, vl_b, tq, tk)


# ---------------------------------------------------------------------------
# Full MultiHeadAttention forward.
# ---------------------------------------------------------------------------
def multi_head_attention(queries, keys, values, params, num_heads, valid_lens=None):
    Wq, Wk, Wv, Wo = params["W_q"], params["W_k"], params["W_v"], params["W_o"]
    B, Sq, dq = queries.shape
    _, Sk, dk = keys.shape
    dv = values.shape[-1]
    nh = Wq.shape[1]
    assert nh % num_heads == 0

    if valid_lens is None:
        vl_b = jnp.full((B,), Sk, dtype=jnp.int32)
    else:
        # TODO(synk): 2-D (per-query) valid_lens not supported; only None / (B,).
        assert valid_lens.ndim == 1
        vl_b = valid_lens.astype(jnp.int32)

    self_attn = (queries is keys) and (keys is values)
    if (self_attn and Wk.shape == Wq.shape and Wv.shape == Wq.shape
            and dq == dk == dv and _fused_qkv_ok(dq, nh, queries.dtype)):
        # Self-attention fast path: one fused projection, X streamed once.
        w_stack = jnp.stack([Wq, Wk, Wv], axis=0)                 # (3, d, nh)
        qkv = fused_qkv_projection(queries.reshape(B * Sq, dq), w_stack)
        qkv = qkv.reshape(3, B, Sq, nh)
        attn = dot_product_attention_fused(qkv, vl_b, num_heads)  # (B, Sq, nh)
    else:
        q = linear(queries.reshape(B * Sq, dq), Wq).reshape(B, Sq, nh)
        k = linear(keys.reshape(B * Sk, dk), Wk).reshape(B, Sk, nh)
        v = linear(values.reshape(B * Sk, dv), Wv).reshape(B, Sk, nh)
        attn = dot_product_attention(q, k, v, vl_b, num_heads)    # (B, Sq, nh)

    # attn is already in concat-head layout (B, Sq, H*Dh): no transpose needed.
    out = linear(attn.reshape(B * Sq, nh), Wo)                    # (B*Sq, out_dim)
    return out.reshape(B, Sq, Wo.shape[1])


# ---------------------------------------------------------------------------
# Pure-JAX reference (mirrors the PyTorch module, inference mode).
# ---------------------------------------------------------------------------
def multi_head_attention_ref(queries, keys, values, params, num_heads, valid_lens=None):
    Wq, Wk, Wv, Wo = params["W_q"], params["W_k"], params["W_v"], params["W_o"]
    B, Sq, _ = queries.shape

    def split(x):
        b, s, _ = x.shape
        x = x.reshape(b, s, num_heads, -1).transpose(0, 2, 1, 3)
        return x.reshape(b * num_heads, s, x.shape[-1])

    q = split(queries @ Wq)
    k = split(keys @ Wk)
    v = split(values @ Wv)
    d = q.shape[-1]
    scores = jnp.einsum("bqd,bkd->bqk", q, k) / math.sqrt(d)
    if valid_lens is not None:
        vl = jnp.repeat(valid_lens.astype(jnp.int32), num_heads)
        col = jnp.arange(scores.shape[-1])[None, None, :]
        scores = jnp.where(col < vl[:, None, None], scores, -1e6)
    attn = jax.nn.softmax(scores, axis=-1)
    out = jnp.einsum("bqk,bkd->bqd", attn, v)
    out = out.reshape(B, num_heads, Sq, d).transpose(0, 2, 1, 3).reshape(B, Sq, -1)
    return out @ Wo


if __name__ == "__main__":
    # Small shapes consistent with the module's forward.
    batch, seq, num_hiddens, num_heads = 2, 8, 32, 4
    query_size = key_size = value_size = 32

    key = jax.random.PRNGKey(0)
    kq, kk, kv_, k1, k2, k3, k4 = jax.random.split(key, 7)

    queries = jax.random.normal(kq, (batch, seq, query_size), dtype=jnp.float32)
    keys = jax.random.normal(kk, (batch, seq, key_size), dtype=jnp.float32)
    values = jax.random.normal(kv_, (batch, seq, value_size), dtype=jnp.float32)
    valid_lens = jnp.array([3, 6], dtype=jnp.int32)

    def init_w(k, fan_in, fan_out):
        return jax.random.normal(k, (fan_in, fan_out), jnp.float32) / math.sqrt(fan_in)

    params = {
        "W_q": init_w(k1, query_size, num_hiddens),
        "W_k": init_w(k2, key_size, num_hiddens),
        "W_v": init_w(k3, value_size, num_hiddens),
        "W_o": init_w(k4, num_hiddens, value_size),
    }

    def check(out, ref, name):
        err = float(jnp.max(jnp.abs(out - ref)))
        scale = float(jnp.max(jnp.abs(ref))) + 1e-6
        assert err / scale < 2e-2, f"{name} mismatch vs reference: {err}"

    # 1) Distinct Q/K/V inputs with valid-length masking (general path).
    out = jax.block_until_ready(
        multi_head_attention(queries, keys, values, params, num_heads, valid_lens))
    ref = multi_head_attention_ref(queries, keys, values, params, num_heads, valid_lens)
    assert out.shape == (batch, seq, value_size)
    check(out, ref, "masked")

    # 2) Unmasked (valid_lens=None).
    out2 = jax.block_until_ready(
        multi_head_attention(queries, keys, values, params, num_heads, None))
    ref2 = multi_head_attention_ref(queries, keys, values, params, num_heads, None)
    check(out2, ref2, "unmasked")

    # 3) Self-attention (same tensor) -> exercises the fused QKV projection path.
    out3 = jax.block_until_ready(
        multi_head_attention(queries, queries, queries, params, num_heads, valid_lens))
    ref3 = multi_head_attention_ref(queries, queries, queries, params, num_heads, valid_lens)
    check(out3, ref3, "self-attention fused")

    print("KERNEL_OK")
</pallas_src>

<mosaic_0001>
module attributes {stable_mosaic.version = 11 : i64} {
  func.func @_linear_kernel(%arg0: i32, %arg1: i32, %arg2: i32, %arg3: memref<16x32xf32, #tpu.memory_space<vmem>>, %arg4: memref<32x32xf32, #tpu.memory_space<vmem>>, %arg5: memref<16x32xf32, #tpu.memory_space<vmem>>, %arg6: memref<16x32xf32, #tpu.memory_space<vmem>>) attributes {dimension_semantics = [#tpu.dimension_semantics<parallel>, #tpu.dimension_semantics<parallel>, #tpu.dimension_semantics<arbitrary>], iteration_bounds = array<i64: 1, 1, 1>, scalar_prefetch = 0 : i64, scratch_operands = 1 : i64, tpu.core_type = #tpu.core_type<tc>, window_params = [{transform_indices = @transform_0, window_bounds = array<i64: 16, 32>}, {transform_indices = @transform_1, window_bounds = array<i64: 32, 32>}, {transform_indices = @transform_2, window_bounds = array<i64: 16, 32>}]} {
    %c0_i32 = arith.constant 0 : i32
    %0 = arith.cmpi eq, %arg2, %c0_i32 : i32
    %1 = arith.extui %0 : i1 to i32
    %c0_i32_0 = arith.constant 0 : i32
    %2 = arith.cmpi ne, %1, %c0_i32_0 : i32
    scf.if %2 {
      %cst_10 = arith.constant 0.000000e+00 : f32
      %12 = vector.broadcast %cst_10 : f32 to vector<16x32xf32>
      %c0_11 = arith.constant 0 : index
      %c0_12 = arith.constant 0 : index
      %13 = vector.load %arg6[%c0_11, %c0_12] : memref<16x32xf32, #tpu.memory_space<vmem>>, vector<16x32xf32>
      tpu.vector_store %arg6[%c0_11, %c0_12], %12 {strides = array<i32>} : memref<16x32xf32, #tpu.memory_space<vmem>>, vector<16x32xf32>,
    } else {
    }
    %c0 = arith.constant 0 : index
    %c0_1 = arith.constant 0 : index
    %3 = vector.load %arg6[%c0, %c0_1] : memref<16x32xf32, #tpu.memory_space<vmem>>, vector<16x32xf32>
    %c0_2 = arith.constant 0 : index
    %c0_3 = arith.constant 0 : index
    %4 = vector.load %arg3[%c0_2, %c0_3] : memref<16x32xf32, #tpu.memory_space<vmem>>, vector<16x32xf32>
    %c0_4 = arith.constant 0 : index
    %c0_5 = arith.constant 0 : index
    %5 = vector.load %arg4[%c0_4, %c0_5] : memref<32x32xf32, #tpu.memory_space<vmem>>, vector<32x32xf32>
    %cst = arith.constant dense<0.000000e+00> : vector<16x32xf32>
    %6 = tpu.matmul %4, %5, %cst {dimension_numbers = #tpu.dot_dimension_numbers<[1], [0], [0], [1], [0, 0, 1, 1], [], []>} : vector<16x32xf32>, vector<32x32xf32>, vector<16x32xf32> -> vector<16x32xf32>
    %7 = arith.addf %3, %6 : vector<16x32xf32>
    %c0_6 = arith.constant 0 : index
    %c0_7 = arith.constant 0 : index
    %8 = vector.load %arg6[%c0_6, %c0_7] : memref<16x32xf32, #tpu.memory_space<vmem>>, vector<16x32xf32>
    tpu.vector_store %arg6[%c0_6, %c0_7], %7 {strides = array<i32>} : memref<16x32xf32, #tpu.memory_space<vmem>>, vector<16x32xf32>,
    %c0_i32_8 = arith.constant 0 : i32
    %9 = arith.cmpi eq, %arg2, %c0_i32_8 : i32
    %10 = arith.extui %9 : i1 to i32
    %c0_i32_9 = arith.constant 0 : i32
    %11 = arith.cmpi ne, %10, %c0_i32_9 : i32
    scf.if %11 {
      %c0_10 = arith.constant 0 : index
      %c0_11 = arith.constant 0 : index
      %12 = vector.load %arg6[%c0_10, %c0_11] : memref<16x32xf32, #tpu.memory_space<vmem>>, vector<16x32xf32>
      %c0_12 = arith.constant 0 : index
      %c0_13 = arith.constant 0 : index
      %13 = vector.load %arg5[%c0_12, %c0_13] : memref<16x32xf32, #tpu.memory_space<vmem>>, vector<16x32xf32>
      tpu.vector_store %arg5[%c0_12, %c0_13], %12 {strides = array<i32>} : memref<16x32xf32, #tpu.memory_space<vmem>>, vector<16x32xf32>,
    } else {
    }
    return
  }
  func.func @transform_0(%arg0: i32, %arg1: i32, %arg2: i32) -> (i32, i32) {
    %c0_i32 = arith.constant 0 : i32
    return %arg0, %arg2 : i32, i32
  }
  func.func @transform_1(%arg0: i32, %arg1: i32, %arg2: i32) -> (i32, i32) {
    %c0_i32 = arith.constant 0 : i32
    return %arg2, %arg1 : i32, i32
  }
  func.func @transform_2(%arg0: i32, %arg1: i32, %arg2: i32) -> (i32, i32) {
    %c0_i32 = arith.constant 0 : i32
    return %arg0, %arg1 : i32, i32
  }
}

</mosaic_0001>

<llo_original>
// kernel: tpu_custom_call.1
$region0: #{tpu_custom_call.1}
  #allocation0 [shape = 'u32[]', space=smem, size = 0x4, offset = 0x4, fixed_abs, tag = 'smem constant byte address 0x4 - core index']
  #allocation1 [shape = 'u32[72,128]{1,0:T(1,128)}', space=vmem, size = 0x9000, scoped, tag = 'internal scratch']
  #allocation2 [shape = 'f32[16,32]{1,0:T(8,128)}', space=vmem, size = 0x2000, scoped, tag = 'scratch operand']
  %s0 = inlined_call_operand.hbm [shape: f32[16,32], index: 0, kind: input, shape index: {}]
  %s1 = inlined_call_operand.hbm [shape: f32[32,32], index: 1, kind: input, shape index: {}]
  %s2 = inlined_call_operand.hbm [shape: f32[16,32], index: 2, kind: output, shape index: {}]
  %s3 = sld [smem:[#allocation0]]
  $region34: #{tpu_custom_call.1} parent=0
    _
  %s5 = ssub.s32 1, %s3
  %s6 = scalar_select 0, %s5, %s3
  $region1: #{tpu_custom_call.1} parent=0
    #allocation3 [shape = 'u8[8192]{0}', space=vmem, size = 0x2000, scoped, tag = 'input window, operand 0, single buffered']
    #allocation4 [shape = 's32[1]{0}', space=sflag, size = 0x4, scoped, tag = 'scoped memory for tpu_custom_call.1']
    #allocation5 [shape = 's32[1]{0}', space=sflag, size = 0x4, scoped, tag = 'scoped memory for tpu_custom_call.1']
    #allocation6 [shape = 'u8[16384]{0}', space=vmem, size = 0x4000, scoped, tag = 'input window, operand 1, single buffered']
    #allocation7 [shape = 's32[1]{0}', space=sflag, size = 0x4, scoped, tag = 'scoped memory for tpu_custom_call.1']
    #allocation8 [shape = 'u8[8192]{0}', space=vmem, size = 0x2000, scoped, tag = 'output window, operand 0, single buffered']
    %7 = vsyncpa [#allocation4], 0
    %8 = vsyncpa [#allocation7], 0
    %9 = vsyncpa [#allocation5], 0
    // Predicated region
    $region2: #{tpu_custom_call.1} parent=1 // pred_check
      _
    $region3: #{tpu_custom_call.1} parent=1 // pred_check_branch
      %11 = sbr.rel (0) target = $region5
    $region4: #{tpu_custom_call.1} parent=1 // pred_region
      %13 = vsyncadd [#allocation4], 0
      %s14 = sshll.u32 %s0, 4
      %s15 = int_to_ptr.hbm [resolvable:$true] %s14
      %s16 = sshll.u32 [#allocation3], 4
      %s17 = int_to_ptr.vmem [resolvable:$true] %s16
      %22 = dma.hbm_to_vmem [thread:$0]  %s15, 256, %s17, [#allocation4], 128, 128, 8
    $region5: #{tpu_custom_call.1} parent=1 // pred_fallthru
      _
    // Predicated region
    $region6: #{tpu_custom_call.1} parent=1 // pred_check
      _
    $region7: #{tpu_custom_call.1} parent=1 // pred_check_branch
      %24 = sbr.rel (0) target = $region9
    $region8: #{tpu_custom_call.1} parent=1 // pred_region
      %26 = vsyncadd [#allocation7], 0
      %s27 = sshll.u32 %s1, 4
      %s28 = int_to_ptr.hbm [resolvable:$true] %s27
      %s29 = sshll.u32 [#allocation6], 4
      %s30 = int_to_ptr.vmem [resolvable:$true] %s29
      %35 = dma.hbm_to_vmem [thread:$0]  %s28, 512, %s30, [#allocation7], 128, 128, 8
    $region9: #{tpu_custom_call.1} parent=1 // pred_fallthru
      _
    // Predicated region
    $region10: #{tpu_custom_call.1} parent=1 // pred_check
      _
    $region11: #{tpu_custom_call.1} parent=1 // pred_check_branch
      %37 = sbr.rel (0) target = $region13
    $region12: #{tpu_custom_call.1} parent=1 // pred_region
      %39 = dma.done [#allocation4], 256
    $region13: #{tpu_custom_call.1} parent=1 // pred_fallthru
      _
    // Predicated region
    $region14: #{tpu_custom_call.1} parent=1 // pred_check
      _
    $region15: #{tpu_custom_call.1} parent=1 // pred_check_branch
      %41 = sbr.rel (0) target = $region17
    $region16: #{tpu_custom_call.1} parent=1 // pred_region
      %43 = dma.done [#allocation7], 512
    $region17: #{tpu_custom_call.1} parent=1 // pred_fallthru
      _
    %p44 = scmp.eq.s32.totalorder 0, 0
    // Predicated region
    $region18: #{tpu_custom_call.1} parent=1 // pred_check
      %p45 = pneg %p44
    $region19: #{tpu_custom_call.1} parent=1 // pred_check_branch
      %47 = sbr.rel (%p45) target = $region21
    $region20: #{tpu_custom_call.1} parent=1 // pred_region
      %vm48 = vcmask 261120
      %49 = vst.msk [vmem:[#allocation2] sm:$0xff] %vm48, 0.0
      %50 = vst.msk [vmem:[#allocation2 + $0x8] sm:$0xff] %vm48, 0.0
    $region21: #{tpu_custom_call.1} parent=1 // pred_fallthru
      _
    %v51 = vld [vmem:[#allocation2] sm:$0xff]
    %v52 = vld [vmem:[#allocation2 + $0x8] sm:$0xff]
    %v53 = vld [vmem:[#allocation3] sm:$0xff]
    %v54 = vld [vmem:[#allocation3 + $0x8] sm:$0xff]
    %v55 = vld [vmem:[#allocation6] sm:$0xff]
    %v56 = vld [vmem:[#allocation6 + $0x8] sm:$0xff]
    %v57 = vld [vmem:[#allocation6 + $0x10] sm:$0xff]
    %v58 = vld [vmem:[#allocation6 + $0x18] sm:$0xff]
    %vm59 = vcmask 261120
    %v61 = vsel %vm59, %v53, 0
    %v64 = vsel %vm59, %v54, 0
    %66 = vmatpush.msra.mxu0 0.0
    %67 = vmatpush.msra.mxu0 0.0
    %68 = vmatpush.msra.mxu0 0.0
    %69 = vmatpush.msra.mxu0 0.0
    %70 = vmatpush.msra.mxu0 0.0
    %71 = vmatpush.msra.mxu0 0.0
    %72 = vmatpush.msra.mxu0 0.0
    %73 = vmatpush.msra.mxu0 0.0
    %74 = vmatpush.msra.mxu0 0.0
    %75 = vmatpush.msra.mxu0 0.0
    %76 = vmatpush.msra.mxu0 0.0
    %77 = vmatpush.msra.mxu0 0.0
    %78 = vmatpush.msra.mxu0 %v58
    %79 = vmatpush.msra.mxu0 %v57
    %80 = vmatpush.msra.mxu0 %v56
    %81 = vmatpush.msra.mxu0 %v55
    %82 = vmatmul.f32.gmra.mxu0 %v61
    %v83 = vpop.f32.mrf.mxu0
    %v84 = vadd.f32 0.0, %v83
    %85 = vmatmul.f32.gmra.mxu0 %v64
    %v86 = vpop.f32.mrf.mxu0
    %v87 = vadd.f32 0.0, %v86
    %88 = vdwg.mxu0
    %v89 = vadd.f32 %v51, %v84
    %v90 = vadd.f32 %v52, %v87
    %91 = vst.msk [vmem:[#allocation2] sm:$0xff] %vm59, %v89
    %92 = vst.msk [vmem:[#allocation2 + $0x8] sm:$0xff] %vm59, %v90
    // Predicated region
    $region22: #{tpu_custom_call.1} parent=1 // pred_check
      %p93 = pneg %p44
    $region23: #{tpu_custom_call.1} parent=1 // pred_check_branch
      %95 = sbr.rel (%p93) target = $region25
    $region24: #{tpu_custom_call.1} parent=1 // pred_region
      %v96 = vld [vmem:[#allocation2] sm:$0xff]
      %v97 = vld [vmem:[#allocation2 + $0x8] sm:$0xff]
      %98 = vst.msk [vmem:[#allocation8] sm:$0xff] %vm59, %v96
      %99 = vst.msk [vmem:[#allocation8 + $0x8] sm:$0xff] %vm59, %v97
    $region25: #{tpu_custom_call.1} parent=1 // pred_fallthru
      _
    // Predicated region
    $region26: #{tpu_custom_call.1} parent=1 // pred_check
      _
    $region27: #{tpu_custom_call.1} parent=1 // pred_check_branch
      %101 = sbr.rel (0) target = $region29
    $region28: #{tpu_custom_call.1} parent=1 // pred_region
      %103 = vsyncadd [#allocation5], 0
      %s104 = sshll.u32 [#allocation8], 4
      %s105 = int_to_ptr.vmem [resolvable:$true] %s104
      %s106 = sshll.u32 %s2, 4
      %s107 = int_to_ptr.hbm [resolvable:$true] %s106
      %112 = dma.vmem_to_hbm [thread:$0]  %s105, 256, %s107, [#allocation5], 128, 128, 8
    $region29: #{tpu_custom_call.1} parent=1 // pred_fallthru
      _
    // Predicated region
    $region30: #{tpu_custom_call.1} parent=1 // pred_check
      _
    $region31: #{tpu_custom_call.1} parent=1 // pred_check_branch
      %114 = sbr.rel (0) target = $region33
    $region32: #{tpu_custom_call.1} parent=1 // pred_region
      %116 = dma.done [#allocation5], 256
    $region33: #{tpu_custom_call.1} parent=1 // pred_fallthru
      _
    %117 = vsyncpa [#allocation4], 1
    %118 = vsyncpa [#allocation7], 1
    %119 = vsyncpa [#allocation5], 1

</llo_original>
